<compile_context>
chip_gen: v6e
topology: v6e:2x2x1
jax: 0.10.0
libtpu: 0.0.40
codegen_flags: <defaults>
</compile_context>

<pallas_src>
import functools

import jax
import jax.numpy as jnp
from jax import lax
from jax.experimental import pallas as pl
from jax.experimental.pallas import tpu as pltpu


_LANE = 128
_NEG = -1e30                     # mask value for padded / excluded class columns
_COMPUTE_DTYPE = jnp.bfloat16    # MXU operand dtype (f32 accumulation via preferred_element_type)


# ---------------------------------------------------------------------------
# Small host-side helpers
# ---------------------------------------------------------------------------
def _round_up(x, m):
    return (x + m - 1) // m * m


def _pad_to(a, shape):
    pads = [(0, t - s) for s, t in zip(a.shape, shape)]
    if any(hi for _, hi in pads):
        a = jnp.pad(a, pads)
    return a


def _prep_img(img_features):
    """NCHW [B, D, H, W] -> [B, S, D] (spatial on sublanes, features on lanes).
    Already-pooled [B, D] -> [B, 1, D]."""
    if img_features.ndim == 4:
        b, d, h, w = img_features.shape
        return jnp.transpose(img_features.reshape(b, d, h * w), (0, 2, 1))
    if img_features.ndim == 2:
        return img_features[:, None, :]
    raise ValueError(f"expected 2D or 4D img_features, got shape {img_features.shape}")


def _get_weights(weights):
    """get_weights() of the module: (w + 1) / sum(w + 1) * num_attributes."""
    w = weights.astype(jnp.float32) + 1.0
    return w / jnp.sum(w) * w.shape[0]


def _vmem_capacity_bytes():
    try:
        cap = getattr(pltpu.get_tpu_info(), "vmem_capacity_bytes", None)
        if cap:
            return int(cap)
    except Exception:
        pass
    return 64 * 1024 * 1024  # conservative default: v7x per-TensorCore VMEM


def _gen_budgets():
    """Generation-aware tiling / VMEM budgets."""
    cap = _vmem_capacity_bytes()
    if cap >= 96 * 1024 * 1024:
        # v5e / v6e: 128 MiB physical VMEM, 1 TensorCore -> big tiles, high vmem limit.
        return dict(vmem_limit=96 * 1024 * 1024, x_budget=20 * 1024 * 1024,
                    tb_cap=512, prefer_multi_step=False)
    # v7x: 64 MiB per TensorCore, 2 TCs -> moderate blocks, even >=2-step grid.
    return dict(vmem_limit=48 * 1024 * 1024, x_budget=10 * 1024 * 1024,
                tb_cap=256, prefer_multi_step=True)


def _pick_batch_tile(b, row_bytes, budget):
    """Largest batch tile (multiple of 8) fitting the per-block byte budget; on v7x
    keep at least 2 (and an even number of) grid steps so both TensorCores engage."""
    b8 = _round_up(max(int(b), 1), 8)
    fit = max(8, (budget["x_budget"] // max(int(row_bytes), 1)) // 8 * 8)
    tb = max(8, min(budget["tb_cap"], b8, fit))
    if budget["prefer_multi_step"] and b8 > 8:
        tb = min(tb, _round_up((b8 + 1) // 2, 8))
    num_tiles = pl.cdiv(b8, tb)
    if budget["prefer_multi_step"] and num_tiles > 1 and num_tiles % 2 == 1:
        num_tiles += 1
    return tb, num_tiles * tb


# ---------------------------------------------------------------------------
# Kernels
# ---------------------------------------------------------------------------
def _scores_block(x_ref, w_ref, attrs_ref, inv_s):
    """avg-pool -> X@W -> L2-normalize rows -> @ (weight-scaled attributes)."""
    # f32-accumulated sublane reduce; no full-tile f32 copy of x is materialized.
    feat = jnp.sum(x_ref[...], axis=1, dtype=jnp.float32) * inv_s            # [TB, D_lane]
    xw = jnp.dot(feat.astype(w_ref.dtype), w_ref[...],
                 preferred_element_type=jnp.float32)                          # [TB, A_pad]
    sq = jnp.sum(xw * xw, axis=-1, keepdims=True)                             # [TB, 1]
    xwn = xw * lax.rsqrt(jnp.maximum(sq, 1e-12))                              # normalizeFeaturesL2
    return jnp.dot(xwn.astype(attrs_ref.dtype), attrs_ref[...],
                   preferred_element_type=jnp.float32)                        # [TB, C_pad]


def sje_train_kernel(x_ref, w_ref, attrs_ref, labels_ref, out_ref, *,
                     margin, num_classes, inv_s):
    scores = _scores_block(x_ref, w_ref, attrs_ref, inv_s)                    # [TB, C_pad] f32
    tb, c_pad = scores.shape
    class_ids = lax.broadcasted_iota(jnp.int32, (tb, c_pad), 1)
    labels = labels_ref[...]                                                  # [TB, 1] int32
    is_gt = class_ids == labels
    gt_score = jnp.sum(jnp.where(is_gt, scores, 0.0), axis=-1, keepdims=True)  # [TB, 1]
    # Single fused mask: keep valid (non-padded) classes that are not the ground truth.
    keep = jnp.logical_and(class_ids < num_classes, jnp.logical_not(is_gt))
    losses = jnp.where(keep, margin + scores - gt_score, _NEG)
    per_sample = jnp.maximum(jnp.max(losses, axis=-1, keepdims=True), 0.0)    # [TB, 1]
    # Lane-dense output block (unmasked stores); wrapper reads lane 0.
    out_ref[...] = jnp.broadcast_to(per_sample, (tb, _LANE))


def sje_test_kernel(x_ref, w_ref, attrs_ref, pred_ref, *, num_classes, inv_s):
    scores = _scores_block(x_ref, w_ref, attrs_ref, inv_s)                    # [TB, C_pad]
    tb, c_pad = scores.shape
    class_ids = lax.broadcasted_iota(jnp.int32, (tb, c_pad), 1)
    scores = jnp.where(class_ids < num_classes, scores, _NEG)                 # mask padded classes
    max_score = jnp.max(scores, axis=-1, keepdims=True)
    # argmax with first-index tie-breaking (matches torch.argmax here)
    idx = jnp.min(jnp.where(scores == max_score, class_ids, c_pad),
                  axis=-1, keepdims=True).astype(jnp.int32)                   # [TB, 1]
    pred_ref[...] = jnp.broadcast_to(idx, (tb, _LANE))


# ---------------------------------------------------------------------------
# pallas_call plumbing
# ---------------------------------------------------------------------------
_SINGLE_BUFFER_RESIDENT = True   # flipped off if this JAX rejects pl.Buffered(1)


def _resident_spec(block_shape, single_buffer):
    index_map = lambda i: (0,) * len(block_shape)
    if single_buffer:
        try:
            # Revisited every grid step -> single buffering avoids the 2x VMEM tax.
            return pl.BlockSpec(block_shape, index_map, pipeline_mode=pl.Buffered(1))
        except Exception:
            pass
    return pl.BlockSpec(block_shape, index_map)


def _build_call(kernel, dm, out_dtype, with_labels, single_buffer):
    tb, b_pad = dm["tb"], dm["b_pad"]
    s_lane, d_lane = dm["s_lane"], dm["d_lane"]
    a_pad, c_pad = dm["a_pad"], dm["c_pad"]
    in_specs = [
        pl.BlockSpec((tb, s_lane, d_lane), lambda i: (i, 0, 0)),   # x tile (pipelined)
        _resident_spec((d_lane, a_pad), single_buffer),            # W (VMEM resident)
        _resident_spec((a_pad, c_pad), single_buffer),             # scaled attributes (resident)
    ]
    if with_labels:
        in_specs.append(pl.BlockSpec((tb, 1), lambda i: (i, 0)))   # labels tile (tiny)
    return pl.pallas_call(
        kernel,
        out_shape=jax.ShapeDtypeStruct((b_pad, _LANE), out_dtype),
        grid_spec=pltpu.PrefetchScalarGridSpec(
            num_scalar_prefetch=0,
            grid=(b_pad // tb,),
            in_specs=in_specs,
            out_specs=pl.BlockSpec((tb, _LANE), lambda i: (i, 0)),
        ),
        compiler_params=pltpu.CompilerParams(
            dimension_semantics=("parallel",),
            vmem_limit_bytes=int(dm["vmem_limit"]),
        ),
    )


def _run_with_fallback(build, args):
    """Try with single-buffered resident operands; fall back if the hint is unsupported."""
    global _SINGLE_BUFFER_RESIDENT
    if _SINGLE_BUFFER_RESIDENT:
        try:
            return build(True)(*args)
        except Exception:
            _SINGLE_BUFFER_RESIDENT = False
    return build(False)(*args)


# ---------------------------------------------------------------------------
# Wrappers
# ---------------------------------------------------------------------------
def _common_operands(img_features, all_class_attributes, W, weights):
    x = _prep_img(img_features)                       # [B, S, D], native dtype (bf16 OK)
    b, s, d = x.shape
    a, nc = all_class_attributes.shape

    # Fold attribute weights into the class-attribute matrix: (w*xwn)@A == xwn@(diag(w)A).
    attrs = _get_weights(weights)[:, None] * all_class_attributes.astype(jnp.float32)
    w_f32 = W.astype(jnp.float32)

    a_pad = _round_up(a, _LANE)
    c_pad = _round_up(nc, _LANE)

    # Lane-dense packing of the x stream when D < 128: [B, S, D] -> [B, S*D/128, 128],
    # with W tiled 128/D times along its rows so the lane-group fold rides the matmul.
    if d % _LANE != 0 and _LANE % d == 0 and (s * d) % _LANE == 0:
        k = _LANE // d
        g = (s * d) // _LANE
        x = x.reshape(b, g, _LANE)
        w_f32 = jnp.tile(w_f32, (k, 1))               # [128, A]
        s_lane, d_lane = g, _LANE
    else:
        s_lane, d_lane = s, d

    budget = _gen_budgets()
    row_bytes = s_lane * d_lane * x.dtype.itemsize
    tb, b_pad = _pick_batch_tile(b, row_bytes, budget)

    x_p = _pad_to(x, (b_pad, s_lane, d_lane))
    w_p = _pad_to(w_f32, (d_lane, a_pad)).astype(_COMPUTE_DTYPE)
    attrs_p = _pad_to(attrs, (a_pad, c_pad)).astype(_COMPUTE_DTYPE)

    dims = dict(b=b, nc=nc, a_pad=a_pad, c_pad=c_pad, tb=tb, b_pad=b_pad,
                s_lane=s_lane, d_lane=d_lane, inv_s=1.0 / float(s),
                vmem_limit=budget["vmem_limit"])
    return x_p, w_p, attrs_p, dims


def sje_forward_train(img_features, all_class_attributes, class_attributes, labels,
                      W, weights, margin):
    del class_attributes  # unused by the reference forward_train
    x_p, w_p, attrs_p, dm = _common_operands(img_features, all_class_attributes, W, weights)
    labels_p = _pad_to(labels.astype(jnp.int32).reshape(-1, 1), (dm["b_pad"], 1))
    kernel = functools.partial(sje_train_kernel, margin=float(margin),
                               num_classes=dm["nc"], inv_s=dm["inv_s"])
    build = lambda sb: _build_call(kernel, dm, jnp.float32, True, sb)
    per_sample = _run_with_fallback(build, (x_p, w_p, attrs_p, labels_p))
    # Finish the mean in the wrapper; padded batch rows are sliced off, lane 0 holds the value.
    return jnp.mean(per_sample[:dm["b"], 0])


def sje_forward_test(img_features, all_class_attributes, W, weights):
    x_p, w_p, attrs_p, dm = _common_operands(img_features, all_class_attributes, W, weights)
    kernel = functools.partial(sje_test_kernel, num_classes=dm["nc"], inv_s=dm["inv_s"])
    build = lambda sb: _build_call(kernel, dm, jnp.int32, False, sb)
    preds = _run_with_fallback(build, (x_p, w_p, attrs_p))
    return preds[:dm["b"], 0]


# ---------------------------------------------------------------------------
# References for the self-test
# ---------------------------------------------------------------------------
def _mirror_scores(img_features, all_class_attributes, W, weights):
    """Exact arithmetic mirror of the kernel (same packing / padding / bf16 operands)."""
    x_p, w_p, attrs_p, dm = _common_operands(img_features, all_class_attributes, W, weights)
    x = x_p[:dm["b"]]
    feat = jnp.sum(x.astype(jnp.float32), axis=1) * dm["inv_s"]
    xw = jnp.dot(feat.astype(w_p.dtype), w_p, preferred_element_type=jnp.float32)
    xwn = xw * lax.rsqrt(jnp.maximum(jnp.sum(xw * xw, axis=-1, keepdims=True), 1e-12))
    scores = jnp.dot(xwn.astype(attrs_p.dtype), attrs_p, preferred_element_type=jnp.float32)
    return scores[:, :dm["nc"]]


def _module_scores(img_features, all_class_attributes, W, weights):
    """Pure-f32 reference matching the PyTorch module's math (looser comparison: the kernel
    intentionally uses bf16 MXU operands)."""
    x = img_features.astype(jnp.float32)
    feat = jnp.mean(x, axis=(2, 3)) if x.ndim == 4 else x
    xw = feat @ W.astype(jnp.float32)
    xwn = xw / jnp.sqrt(jnp.maximum(jnp.sum(xw * xw, axis=1, keepdims=True), 1e-12))
    xwn = _get_weights(weights)[None, :] * xwn
    return xwn @ all_class_attributes.astype(jnp.float32)


def _loss_from_scores(scores, labels, margin):
    n = scores.shape[0]
    gt = scores[jnp.arange(n), labels][:, None]
    losses = margin + scores - gt
    losses = losses.at[jnp.arange(n), labels].set(0.0)
    return jnp.mean(jnp.maximum(jnp.max(losses, axis=1), 0.0))


# ---------------------------------------------------------------------------
if __name__ == "__main__":
    B = 4            # batch
    D = 32           # img_feature_size (NCHW channels)
    H = Wsp = 8      # spatial -> S = 64
    A = 16           # num_attributes
    NC = 10          # num_classes
    margin = 0.2

    key = jax.random.PRNGKey(0)
    k_img, k_w, k_attr, k_lab, k_wt, k_img2 = jax.random.split(key, 6)

    # __init__: W = rand(D, A), each column L2-normalized over the D axis.
    W = jax.random.uniform(k_w, (D, A), dtype=jnp.float32)
    W = W / jnp.sqrt(jnp.maximum(jnp.sum(W * W, axis=0, keepdims=True), 1e-12))
    weights = 0.1 * jax.random.normal(k_wt, (A,), dtype=jnp.float32)

    img_features = jax.random.normal(k_img, (B, D, H, Wsp), dtype=jnp.float32)
    all_class_attributes = jax.random.normal(k_attr, (A, NC), dtype=jnp.float32)
    labels = jax.random.randint(k_lab, (B,), 0, NC, dtype=jnp.int32)

    # --- train forward (scalar ranking hinge loss), NCHW input path ---
    loss = jax.block_until_ready(
        sje_forward_train(img_features, all_class_attributes, None, labels, W, weights, margin))
    mirror_loss = _loss_from_scores(
        _mirror_scores(img_features, all_class_attributes, W, weights), labels, margin)
    module_loss = _loss_from_scores(
        _module_scores(img_features, all_class_attributes, W, weights), labels, margin)
    assert jnp.allclose(loss, mirror_loss, rtol=1e-3, atol=1e-4), (loss, mirror_loss)
    assert jnp.allclose(loss, module_loss, rtol=5e-2, atol=5e-2), (loss, module_loss)

    # --- test forward (argmax class predictions) ---
    preds = jax.block_until_ready(sje_forward_test(img_features, all_class_attributes, W, weights))
    mscores = _module_scores(img_features, all_class_attributes, W, weights)
    chosen = mscores[jnp.arange(B), preds]
    top = jnp.max(mscores, axis=1)
    assert preds.shape == (B,) and bool(jnp.all((preds >= 0) & (preds < NC))), preds
    # bf16-tolerant argmax check: the chosen class must score within eps of the true max.
    assert bool(jnp.all(chosen >= top - 0.05)), (preds, jnp.argmax(mscores, axis=1))

    # --- already-pooled [B, img_feature_size] input path ---
    img2d = jax.random.normal(k_img2, (B, D), dtype=jnp.float32)
    loss2 = jax.block_until_ready(
        sje_forward_train(img2d, all_class_attributes, None, labels, W, weights, margin))
    mirror_loss2 = _loss_from_scores(
        _mirror_scores(img2d, all_class_attributes, W, weights), labels, margin)
    assert jnp.allclose(loss2, mirror_loss2, rtol=1e-3, atol=1e-4), (loss2, mirror_loss2)

    print("KERNEL_OK")
</pallas_src>

<mosaic_0001>
module attributes {stable_mosaic.version = 11 : i64} {
  func.func @sje_train_kernel(%arg0: i32, %arg1: memref<8x16x128xf32, #tpu.memory_space<vmem>>, %arg2: memref<128x128xbf16, #tpu.memory_space<vmem>>, %arg3: memref<128x128xbf16, #tpu.memory_space<vmem>>, %arg4: memref<8x1xi32, #tpu.memory_space<vmem>>, %arg5: memref<8x128xf32, #tpu.memory_space<vmem>>) attributes {dimension_semantics = [#tpu.dimension_semantics<parallel>], iteration_bounds = array<i64: 1>, scalar_prefetch = 0 : i64, scratch_operands = 0 : i64, tpu.core_type = #tpu.core_type<tc>, window_params = [{transform_indices = @transform_0, window_bounds = array<i64: 8, 16, 128>}, {pipeline_mode = #tpu.pipeline_mode<synchronous>, transform_indices = @transform_1, window_bounds = array<i64: 128, 128>}, {pipeline_mode = #tpu.pipeline_mode<synchronous>, transform_indices = @transform_2, window_bounds = array<i64: 128, 128>}, {transform_indices = @transform_3, window_bounds = array<i64: 8, 1>}, {transform_indices = @transform_4, window_bounds = array<i64: 8, 128>}]} {
    %c0 = arith.constant 0 : index
    %c0_0 = arith.constant 0 : index
    %c0_1 = arith.constant 0 : index
    %0 = vector.load %arg1[%c0, %c0_0, %c0_1] : memref<8x16x128xf32, #tpu.memory_space<vmem>>, vector<8x16x128xf32>
    %cst = arith.constant dense<0.000000e+00> : vector<8x128xf32>
    %1 = vector.multi_reduction <add>, %0, %cst [1] : vector<8x16x128xf32> to vector<8x128xf32>
    %cst_2 = arith.constant 1.562500e-02 : f32
    %2 = vector.broadcast %cst_2 : f32 to vector<8x128xf32>
    %3 = arith.mulf %1, %2 : vector<8x128xf32>
    %4 = arith.truncf %3 : vector<8x128xf32> to vector<8x128xbf16>
    %c0_3 = arith.constant 0 : index
    %c0_4 = arith.constant 0 : index
    %5 = vector.load %arg2[%c0_3, %c0_4] : memref<128x128xbf16, #tpu.memory_space<vmem>>, vector<128x128xbf16>
    %cst_5 = arith.constant dense<0.000000e+00> : vector<8x128xf32>
    %6 = tpu.matmul %4, %5, %cst_5 {dimension_numbers = #tpu.dot_dimension_numbers<[1], [0], [0], [1], [0, 0, 1, 1], [], []>} : vector<8x128xbf16>, vector<128x128xbf16>, vector<8x128xf32> -> vector<8x128xf32>
    %7 = arith.mulf %6, %6 : vector<8x128xf32>
    %cst_6 = arith.constant dense<0.000000e+00> : vector<8xf32>
    %8 = vector.multi_reduction <add>, %7, %cst_6 [1] : vector<8x128xf32> to vector<8xf32>
    %9 = vector.shape_cast %8 : vector<8xf32> to vector<8x1xf32>
    %cst_7 = arith.constant 9.99999996E-13 : f32
    %10 = vector.broadcast %cst_7 : f32 to vector<8x1xf32>
    %11 = arith.maximumf %9, %10 : vector<8x1xf32>
    %12 = math.rsqrt %11 : vector<8x1xf32>
    %13 = vector.broadcast %12 : vector<8x1xf32> to vector<8x128xf32>
    %14 = arith.mulf %6, %13 : vector<8x128xf32>
    %15 = arith.truncf %14 : vector<8x128xf32> to vector<8x128xbf16>
    %c0_8 = arith.constant 0 : index
    %c0_9 = arith.constant 0 : index
    %16 = vector.load %arg3[%c0_8, %c0_9] : memref<128x128xbf16, #tpu.memory_space<vmem>>, vector<128x128xbf16>
    %cst_10 = arith.constant dense<0.000000e+00> : vector<8x128xf32>
    %17 = tpu.matmul %15, %16, %cst_10 {dimension_numbers = #tpu.dot_dimension_numbers<[1], [0], [0], [1], [0, 0, 1, 1], [], []>} : vector<8x128xbf16>, vector<128x128xbf16>, vector<8x128xf32> -> vector<8x128xf32>
    %18 = tpu.iota {dimensions = array<i32: 1>} : vector<8x128xi32>
    %c0_11 = arith.constant 0 : index
    %c0_12 = arith.constant 0 : index
    %19 = vector.load %arg4[%c0_11, %c0_12] : memref<8x1xi32, #tpu.memory_space<vmem>>, vector<8x1xi32>
    %20 = vector.broadcast %19 : vector<8x1xi32> to vector<8x128xi32>
    %21 = arith.cmpi eq, %18, %20 : vector<8x128xi32>
    %cst_13 = arith.constant 0.000000e+00 : f32
    %22 = vector.broadcast %cst_13 : f32 to vector<8x128xf32>
    %23 = arith.select %21, %17, %22 : vector<8x128xi1>, vector<8x128xf32>
    %cst_14 = arith.constant dense<0.000000e+00> : vector<8xf32>
    %24 = vector.multi_reduction <add>, %23, %cst_14 [1] : vector<8x128xf32> to vector<8xf32>
    %25 = vector.shape_cast %24 : vector<8xf32> to vector<8x1xf32>
    %c10_i32 = arith.constant 10 : i32
    %26 = vector.broadcast %c10_i32 : i32 to vector<8x128xi32>
    %27 = arith.cmpi slt, %18, %26 : vector<8x128xi32>
    %cst_15 = arith.constant dense<true> : vector<8x128xi1>
    %28 = arith.xori %21, %cst_15 : vector<8x128xi1>
    %29 = arith.andi %27, %28 : vector<8x128xi1>
    %cst_16 = arith.constant 2.000000e-01 : f32
    %30 = vector.broadcast %cst_16 : f32 to vector<8x128xf32>
    %31 = arith.addf %30, %17 : vector<8x128xf32>
    %32 = vector.broadcast %25 : vector<8x1xf32> to vector<8x128xf32>
    %33 = arith.subf %31, %32 : vector<8x128xf32>
    %cst_17 = arith.constant -1.000000e+30 : f32
    %34 = vector.broadcast %cst_17 : f32 to vector<8x128xf32>
    %35 = arith.select %29, %33, %34 : vector<8x128xi1>, vector<8x128xf32>
    %cst_18 = arith.constant dense<0xFF800000> : vector<8xf32>
    %36 = vector.multi_reduction <maximumf>, %35, %cst_18 [1] : vector<8x128xf32> to vector<8xf32>
    %37 = vector.shape_cast %36 : vector<8xf32> to vector<8x1xf32>
    %cst_19 = arith.constant 0.000000e+00 : f32
    %38 = vector.broadcast %cst_19 : f32 to vector<8x1xf32>
    %39 = arith.maximumf %37, %38 : vector<8x1xf32>
    %40 = vector.shape_cast %39 : vector<8x1xf32> to vector<8x1xf32>
    %41 = vector.broadcast %40 : vector<8x1xf32> to vector<8x128xf32>
    %c0_20 = arith.constant 0 : index
    %c0_21 = arith.constant 0 : index
    %42 = vector.load %arg5[%c0_20, %c0_21] : memref<8x128xf32, #tpu.memory_space<vmem>>, vector<8x128xf32>
    tpu.vector_store %arg5[%c0_20, %c0_21], %41 {strides = array<i32>} : memref<8x128xf32, #tpu.memory_space<vmem>>, vector<8x128xf32>,
    return
  }
  func.func @transform_0(%arg0: i32) -> (i32, i32, i32) {
    %c0_i32 = arith.constant 0 : i32
    %c0_i32_0 = arith.constant 0 : i32
    %c0_i32_1 = arith.constant 0 : i32
    return %arg0, %c0_i32, %c0_i32_0 : i32, i32, i32
  }
  func.func @transform_1(%arg0: i32) -> (i32, i32) {
    %c0_i32 = arith.constant 0 : i32
    %c0_i32_0 = arith.constant 0 : i32
    %c0_i32_1 = arith.constant 0 : i32
    return %c0_i32, %c0_i32_0 : i32, i32
  }
  func.func @transform_2(%arg0: i32) -> (i32, i32) {
    %c0_i32 = arith.constant 0 : i32
    %c0_i32_0 = arith.constant 0 : i32
    %c0_i32_1 = arith.constant 0 : i32
    return %c0_i32, %c0_i32_0 : i32, i32
  }
  func.func @transform_3(%arg0: i32) -> (i32, i32) {
    %c0_i32 = arith.constant 0 : i32
    %c0_i32_0 = arith.constant 0 : i32
    return %arg0, %c0_i32 : i32, i32
  }
  func.func @transform_4(%arg0: i32) -> (i32, i32) {
    %c0_i32 = arith.constant 0 : i32
    %c0_i32_0 = arith.constant 0 : i32
    return %arg0, %c0_i32 : i32, i32
  }
}

module attributes {stable_mosaic.version = 11 : i64} {
  func.func @sje_train_kernel(%arg0: i32, %arg1: memref<8x16x128xf32, #tpu.memory_space<vmem>>, %arg2: memref<128x128xbf16, #tpu.memory_space<vmem>>, %arg3: memref<128x128xbf16, #tpu.memory_space<vmem>>, %arg4: memref<8x1xi32, #tpu.memory_space<vmem>>, %arg5: memref<8x128xf32, #tpu.memory_space<vmem>>) attributes {dimension_semantics = [#tpu.dimension_semantics<parallel>], iteration_bounds = array<i64: 1>, scalar_prefetch = 0 : i64, scratch_operands = 0 : i64, tpu.core_type = #tpu.core_type<tc>, window_params = [{transform_indices = @transform_0, window_bounds = array<i64: 8, 16, 128>}, {pipeline_mode = #tpu.pipeline_mode<synchronous>, transform_indices = @transform_1, window_bounds = array<i64: 128, 128>}, {pipeline_mode = #tpu.pipeline_mode<synchronous>, transform_indices = @transform_2, window_bounds = array<i64: 128, 128>}, {transform_indices = @transform_3, window_bounds = array<i64: 8, 1>}, {transform_indices = @transform_4, window_bounds = array<i64: 8, 128>}]} {
    %c0 = arith.constant 0 : index
    %c0_0 = arith.constant 0 : index
    %c0_1 = arith.constant 0 : index
    %0 = vector.load %arg1[%c0, %c0_0, %c0_1] : memref<8x16x128xf32, #tpu.memory_space<vmem>>, vector<8x16x128xf32>
    %cst = arith.constant dense<0.000000e+00> : vector<8x128xf32>
    %1 = vector.multi_reduction <add>, %0, %cst [1] : vector<8x16x128xf32> to vector<8x128xf32>
    %cst_2 = arith.constant 1.562500e-02 : f32
    %2 = vector.broadcast %cst_2 : f32 to vector<8x128xf32>
    %3 = arith.mulf %1, %2 : vector<8x128xf32>
    %4 = arith.truncf %3 : vector<8x128xf32> to vector<8x128xbf16>
    %c0_3 = arith.constant 0 : index
    %c0_4 = arith.constant 0 : index
    %5 = vector.load %arg2[%c0_3, %c0_4] : memref<128x128xbf16, #tpu.memory_space<vmem>>, vector<128x128xbf16>
    %cst_5 = arith.constant dense<0.000000e+00> : vector<8x128xf32>
    %6 = tpu.matmul %4, %5, %cst_5 {dimension_numbers = #tpu.dot_dimension_numbers<[1], [0], [0], [1], [0, 0, 1, 1], [], []>} : vector<8x128xbf16>, vector<128x128xbf16>, vector<8x128xf32> -> vector<8x128xf32>
    %7 = arith.mulf %6, %6 : vector<8x128xf32>
    %cst_6 = arith.constant dense<0.000000e+00> : vector<8xf32>
    %8 = vector.multi_reduction <add>, %7, %cst_6 [1] : vector<8x128xf32> to vector<8xf32>
    %9 = vector.shape_cast %8 : vector<8xf32> to vector<8x1xf32>
    %cst_7 = arith.constant 9.99999996E-13 : f32
    %10 = vector.broadcast %cst_7 : f32 to vector<8x1xf32>
    %11 = arith.maximumf %9, %10 : vector<8x1xf32>
    %12 = math.rsqrt %11 : vector<8x1xf32>
    %13 = vector.broadcast %12 : vector<8x1xf32> to vector<8x128xf32>
    %14 = arith.mulf %6, %13 : vector<8x128xf32>
    %15 = arith.truncf %14 : vector<8x128xf32> to vector<8x128xbf16>
    %c0_8 = arith.constant 0 : index
    %c0_9 = arith.constant 0 : index
    %16 = vector.load %arg3[%c0_8, %c0_9] : memref<128x128xbf16, #tpu.memory_space<vmem>>, vector<128x128xbf16>
    %cst_10 = arith.constant dense<0.000000e+00> : vector<8x128xf32>
    %17 = tpu.matmul %15, %16, %cst_10 {dimension_numbers = #tpu.dot_dimension_numbers<[1], [0], [0], [1], [0, 0, 1, 1], [], []>} : vector<8x128xbf16>, vector<128x128xbf16>, vector<8x128xf32> -> vector<8x128xf32>
    %18 = tpu.iota {dimensions = array<i32: 1>} : vector<8x128xi32>
    %c0_11 = arith.constant 0 : index
    %c0_12 = arith.constant 0 : index
    %19 = vector.load %arg4[%c0_11, %c0_12] : memref<8x1xi32, #tpu.memory_space<vmem>>, vector<8x1xi32>
    %20 = vector.broadcast %19 : vector<8x1xi32> to vector<8x128xi32>
    %21 = arith.cmpi eq, %18, %20 : vector<8x128xi32>
    %cst_13 = arith.constant 0.000000e+00 : f32
    %22 = vector.broadcast %cst_13 : f32 to vector<8x128xf32>
    %23 = arith.select %21, %17, %22 : vector<8x128xi1>, vector<8x128xf32>
    %cst_14 = arith.constant dense<0.000000e+00> : vector<8xf32>
    %24 = vector.multi_reduction <add>, %23, %cst_14 [1] : vector<8x128xf32> to vector<8xf32>
    %25 = vector.shape_cast %24 : vector<8xf32> to vector<8x1xf32>
    %c10_i32 = arith.constant 10 : i32
    %26 = vector.broadcast %c10_i32 : i32 to vector<8x128xi32>
    %27 = arith.cmpi slt, %18, %26 : vector<8x128xi32>
    %cst_15 = arith.constant dense<true> : vector<8x128xi1>
    %28 = arith.xori %21, %cst_15 : vector<8x128xi1>
    %29 = arith.andi %27, %28 : vector<8x128xi1>
    %cst_16 = arith.constant 2.000000e-01 : f32
    %30 = vector.broadcast %cst_16 : f32 to vector<8x128xf32>
    %31 = arith.addf %30, %17 : vector<8x128xf32>
    %32 = vector.broadcast %25 : vector<8x1xf32> to vector<8x128xf32>
    %33 = arith.subf %31, %32 : vector<8x128xf32>
    %cst_17 = arith.constant -1.000000e+30 : f32
    %34 = vector.broadcast %cst_17 : f32 to vector<8x128xf32>
    %35 = arith.select %29, %33, %34 : vector<8x128xi1>, vector<8x128xf32>
    %cst_18 = arith.constant dense<0xFF800000> : vector<8xf32>
    %36 = vector.multi_reduction <maximumf>, %35, %cst_18 [1] : vector<8x128xf32> to vector<8xf32>
    %37 = vector.shape_cast %36 : vector<8xf32> to vector<8x1xf32>
    %cst_19 = arith.constant 0.000000e+00 : f32
    %38 = vector.broadcast %cst_19 : f32 to vector<8x1xf32>
    %39 = arith.maximumf %37, %38 : vector<8x1xf32>
    %40 = vector.shape_cast %39 : vector<8x1xf32> to vector<8x1xf32>
    %41 = vector.broadcast %40 : vector<8x1xf32> to vector<8x128xf32>
    %c0_20 = arith.constant 0 : index
    %c0_21 = arith.constant 0 : index
    %42 = vector.load %arg5[%c0_20, %c0_21] : memref<8x128xf32, #tpu.memory_space<vmem>>, vector<8x128xf32>
    tpu.vector_store %arg5[%c0_20, %c0_21], %41 {strides = array<i32>} : memref<8x128xf32, #tpu.memory_space<vmem>>, vector<8x128xf32>,
    return
  }
  func.func @transform_0(%arg0: i32) -> (i32, i32, i32) {
    %c0_i32 = arith.constant 0 : i32
    %c0_i32_0 = arith.constant 0 : i32
    %c0_i32_1 = arith.constant 0 : i32
    return %arg0, %c0_i32, %c0_i32_0 : i32, i32, i32
  }
  func.func @transform_1(%arg0: i32) -> (i32, i32) {
    %c0_i32 = arith.constant 0 : i32
    %c0_i32_0 = arith.constant 0 : i32
    %c0_i32_1 = arith.constant 0 : i32
    return %c0_i32, %c0_i32_0 : i32, i32
  }
  func.func @transform_2(%arg0: i32) -> (i32, i32) {
    %c0_i32 = arith.constant 0 : i32
    %c0_i32_0 = arith.constant 0 : i32
    %c0_i32_1 = arith.constant 0 : i32
    return %c0_i32, %c0_i32_0 : i32, i32
  }
  func.func @transform_3(%arg0: i32) -> (i32, i32) {
    %c0_i32 = arith.constant 0 : i32
    %c0_i32_0 = arith.constant 0 : i32
    return %arg0, %c0_i32 : i32, i32
  }
  func.func @transform_4(%arg0: i32) -> (i32, i32) {
    %c0_i32 = arith.constant 0 : i32
    %c0_i32_0 = arith.constant 0 : i32
    return %arg0, %c0_i32 : i32, i32
  }
}

</mosaic_0001>

<llo_original>
// kernel: tpu_custom_call.1
$region0: #{tpu_custom_call.1}
  #allocation0 [shape = 'u32[]', space=smem, size = 0x4, offset = 0x4, fixed_abs, tag = 'smem constant byte address 0x4 - core index']
  #allocation1 [shape = 'u32[144,128]{1,0:T(1,128)}', space=vmem, size = 0x12000, scoped, tag = 'internal scratch']
  %s0 = inlined_call_operand.hbm [shape: f32[8,16,128], index: 0, kind: input, shape index: {}]
  %s1 = inlined_call_operand.hbm [shape: bf16[128,128], index: 1, kind: input, shape index: {}]
  %s2 = inlined_call_operand.hbm [shape: bf16[128,128], index: 2, kind: input, shape index: {}]
  %s3 = inlined_call_operand.vmem [shape: s32[8,1], index: 3, kind: input, shape index: {}]
  %s4 = inlined_call_operand.hbm [shape: f32[8,128], index: 4, kind: output, shape index: {}]
  %s5 = sld [smem:[#allocation0]]
  $region38: #{tpu_custom_call.1} parent=0
    _
  %s7 = ssub.s32 1, %s5
  %s8 = scalar_select 0, %s7, %s5
  $region1: #{tpu_custom_call.1} parent=0
    #allocation2 [shape = 'u8[65536]{0}', space=vmem, size = 0x10000, scoped, tag = 'input window, operand 0, single buffered']
    #allocation3 [shape = 's32[1]{0}', space=sflag, size = 0x4, scoped, tag = 'scoped memory for tpu_custom_call.1']
    #allocation4 [shape = 's32[1]{0}', space=sflag, size = 0x4, scoped, tag = 'scoped memory for tpu_custom_call.1']
    #allocation5 [shape = 'u8[32768]{0}', space=vmem, size = 0x8000, scoped, tag = 'input window, operand 1, single buffered']
    #allocation6 [shape = 's32[1]{0}', space=sflag, size = 0x4, scoped, tag = 'scoped memory for tpu_custom_call.1']
    #allocation7 [shape = 'u8[32768]{0}', space=vmem, size = 0x8000, scoped, tag = 'input window, operand 2, single buffered']
    #allocation8 [shape = 'u8[4096]{0}', space=vmem, size = 0x1000, scoped, tag = 'output window, operand 0, single buffered']
    %9 = vsyncpa [#allocation3], 0
    %10 = vsyncpa [#allocation6], 0
    %11 = vsyncpa [#allocation4], 0
    // Predicated region
    $region2: #{tpu_custom_call.1} parent=1 // pred_check
      _
    $region3: #{tpu_custom_call.1} parent=1 // pred_check_branch
      %13 = sbr.rel (0) target = $region5
    $region4: #{tpu_custom_call.1} parent=1 // pred_region
      %s15 = ssub.s32 2048, 2048
      %16 = vsyncadd [#allocation3], %s15
      %s17 = sshll.u32 [#allocation2], 4
      %s18 = int_to_ptr.vmem [resolvable:$true] %s17
      %23 = dma.hbm_to_vmem [thread:$0]  %s0, 2048, %s18, [#allocation3], 128, 128, 8
    $region5: #{tpu_custom_call.1} parent=1 // pred_fallthru
      _
    // Predicated region
    $region6: #{tpu_custom_call.1} parent=1 // pred_check
      _
    $region7: #{tpu_custom_call.1} parent=1 // pred_check_branch
      %25 = sbr.rel (0) target = $region9
    $region8: #{tpu_custom_call.1} parent=1 // pred_region
      %s27 = ssub.s32 1024, 1024
      %28 = vsyncadd [#allocation6], %s27
      %s29 = sshll.u32 [#allocation5], 4
      %s30 = int_to_ptr.vmem [resolvable:$true] %s29
      %35 = dma.hbm_to_vmem [thread:$0]  %s1, 1024, %s30, [#allocation6], 64, 64, 4
    $region9: #{tpu_custom_call.1} parent=1 // pred_fallthru
      _
    // Predicated region
    $region10: #{tpu_custom_call.1} parent=1 // pred_check
      _
    $region11: #{tpu_custom_call.1} parent=1 // pred_check_branch
      %37 = sbr.rel (0) target = $region13
    $region12: #{tpu_custom_call.1} parent=1 // pred_region
      %s39 = ssub.s32 1024, 1024
      %40 = vsyncadd [#allocation6], %s39
      %s41 = sshll.u32 [#allocation7], 4
      %s42 = int_to_ptr.vmem [resolvable:$true] %s41
      %47 = dma.hbm_to_vmem [thread:$0]  %s2, 1024, %s42, [#allocation6], 64, 64, 4
    $region13: #{tpu_custom_call.1} parent=1 // pred_fallthru
      _
    // Predicated region
    $region14: #{tpu_custom_call.1} parent=1 // pred_check
      _
    $region15: #{tpu_custom_call.1} parent=1 // pred_check_branch
      %49 = sbr.rel (0) target = $region17
    $region16: #{tpu_custom_call.1} parent=1 // pred_region
      _
    $region17: #{tpu_custom_call.1} parent=1 // pred_fallthru
      _
    // Predicated region
    $region18: #{tpu_custom_call.1} parent=1 // pred_check
      _
    $region19: #{tpu_custom_call.1} parent=1 // pred_check_branch
      %51 = sbr.rel (0) target = $region21
    $region20: #{tpu_custom_call.1} parent=1 // pred_region
      %52 = dma.done [#allocation3], 2048
    $region21: #{tpu_custom_call.1} parent=1 // pred_fallthru
      _
    // Predicated region
    $region22: #{tpu_custom_call.1} parent=1 // pred_check
      _
    $region23: #{tpu_custom_call.1} parent=1 // pred_check_branch
      %54 = sbr.rel (0) target = $region25
    $region24: #{tpu_custom_call.1} parent=1 // pred_region
      %55 = dma.done [#allocation6], 1024
    $region25: #{tpu_custom_call.1} parent=1 // pred_fallthru
      _
    // Predicated region
    $region26: #{tpu_custom_call.1} parent=1 // pred_check
      _
    $region27: #{tpu_custom_call.1} parent=1 // pred_check_branch
      %57 = sbr.rel (0) target = $region29
    $region28: #{tpu_custom_call.1} parent=1 // pred_region
      %58 = dma.done [#allocation6], 1024
    $region29: #{tpu_custom_call.1} parent=1 // pred_fallthru
      _
    %v60 = vld [vmem:[#allocation2] sm:$0xff]
    %v61 = vld [vmem:[#allocation2 + $0x8] sm:$0xff]
    %v62 = vld [vmem:[#allocation2 + $0x10] sm:$0xff]
    %v63 = vld [vmem:[#allocation2 + $0x18] sm:$0xff]
    %v64 = vld [vmem:[#allocation2 + $0x20] sm:$0xff]
    %v65 = vld [vmem:[#allocation2 + $0x28] sm:$0xff]
    %v66 = vld [vmem:[#allocation2 + $0x30] sm:$0xff]
    %v67 = vld [vmem:[#allocation2 + $0x38] sm:$0xff]
    %v68 = vld [vmem:[#allocation2 + $0x40] sm:$0xff]
    %v69 = vld [vmem:[#allocation2 + $0x48] sm:$0xff]
    %v70 = vld [vmem:[#allocation2 + $0x50] sm:$0xff]
    %v71 = vld [vmem:[#allocation2 + $0x58] sm:$0xff]
    %v72 = vld [vmem:[#allocation2 + $0x60] sm:$0xff]
    %v73 = vld [vmem:[#allocation2 + $0x68] sm:$0xff]
    %v74 = vld [vmem:[#allocation2 + $0x70] sm:$0xff]
    %v75 = vld [vmem:[#allocation2 + $0x78] sm:$0xff]
    %v76 = vadd.f32 %v60, %v61
    %v77 = vrot.slane %v76, 4
    %v78 = vadd.f32 %v76, %v77
    %v79 = vrot.slane %v78, 2
    %v80 = vadd.f32 %v78, %v79
    %v81 = vrot.slane %v80, 1
    %v82 = vadd.f32 %v80, %v81
    %v83 = vadd.f32 %v62, %v63
    %v84 = vrot.slane %v83, 4
    %v85 = vadd.f32 %v83, %v84
    %v86 = vrot.slane %v85, 2
    %v87 = vadd.f32 %v85, %v86
    %v88 = vrot.slane %v87, 1
    %v89 = vadd.f32 %v87, %v88
    %v90 = vadd.f32 %v64, %v65
    %v91 = vrot.slane %v90, 4
    %v92 = vadd.f32 %v90, %v91
    %v93 = vrot.slane %v92, 2
    %v94 = vadd.f32 %v92, %v93
    %v95 = vrot.slane %v94, 1
    %v96 = vadd.f32 %v94, %v95
    %v97 = vadd.f32 %v66, %v67
    %v98 = vrot.slane %v97, 4
    %v99 = vadd.f32 %v97, %v98
    %v100 = vrot.slane %v99, 2
    %v101 = vadd.f32 %v99, %v100
    %v102 = vrot.slane %v101, 1
    %v103 = vadd.f32 %v101, %v102
    %v104 = vadd.f32 %v68, %v69
    %v105 = vrot.slane %v104, 4
    %v106 = vadd.f32 %v104, %v105
    %v107 = vrot.slane %v106, 2
    %v108 = vadd.f32 %v106, %v107
    %v109 = vrot.slane %v108, 1
    %v110 = vadd.f32 %v108, %v109
    %v111 = vadd.f32 %v70, %v71
    %v112 = vrot.slane %v111, 4
    %v113 = vadd.f32 %v111, %v112
    %v114 = vrot.slane %v113, 2
    %v115 = vadd.f32 %v113, %v114
    %v116 = vrot.slane %v115, 1
    %v117 = vadd.f32 %v115, %v116
    %v118 = vadd.f32 %v72, %v73
    %v119 = vrot.slane %v118, 4
    %v120 = vadd.f32 %v118, %v119
    %v121 = vrot.slane %v120, 2
    %v122 = vadd.f32 %v120, %v121
    %v123 = vrot.slane %v122, 1
    %v124 = vadd.f32 %v122, %v123
    %v125 = vadd.f32 %v74, %v75
    %v126 = vrot.slane %v125, 4
    %v127 = vadd.f32 %v125, %v126
    %v128 = vrot.slane %v127, 2
    %v129 = vadd.f32 %v127, %v128
    %v130 = vrot.slane %v129, 1
    %v131 = vadd.f32 %v129, %v130
    %v132 = vmul.f32 %v82, 0.015625
    %v133 = vmul.f32 %v89, 0.015625
    %v134 = vmul.f32 %v96, 0.015625
    %v135 = vmul.f32 %v103, 0.015625
    %v136 = vmul.f32 %v110, 0.015625
    %v137 = vmul.f32 %v117, 0.015625
    %v138 = vmul.f32 %v124, 0.015625
    %v139 = vmul.f32 %v131, 0.015625
    %v140 = vpack.c.bf16 %v132, %v132
    %v141 = vpack.c.bf16 %v133, %v133
    %v142 = vpack.c.bf16 %v134, %v134
    %v143 = vpack.c.bf16 %v135, %v135
    %v144 = vpack.c.bf16 %v136, %v136
    %v145 = vpack.c.bf16 %v137, %v137
    %v146 = vpack.c.bf16 %v138, %v138
    %v147 = vpack.c.bf16 %v139, %v139
    %v148 = vld [vmem:[#allocation5] sm:$0xf]
    %v149 = vld [vmem:[#allocation5 + $0x4] sm:$0xf]
    %v150 = vld [vmem:[#allocation5 + $0x8] sm:$0xf]
    %v151 = vld [vmem:[#allocation5 + $0xc] sm:$0xf]
    %v152 = vld [vmem:[#allocation5 + $0x10] sm:$0xf]
    %v153 = vld [vmem:[#allocation5 + $0x14] sm:$0xf]
    %v154 = vld [vmem:[#allocation5 + $0x18] sm:$0xf]
    %v155 = vld [vmem:[#allocation5 + $0x1c] sm:$0xf]
    %v156 = vld [vmem:[#allocation5 + $0x20] sm:$0xf]
    %v157 = vld [vmem:[#allocation5 + $0x24] sm:$0xf]
    %v158 = vld [vmem:[#allocation5 + $0x28] sm:$0xf]
    %v159 = vld [vmem:[#allocation5 + $0x2c] sm:$0xf]
    %v160 = vld [vmem:[#allocation5 + $0x30] sm:$0xf]
    %v161 = vld [vmem:[#allocation5 + $0x34] sm:$0xf]
    %v162 = vld [vmem:[#allocation5 + $0x38] sm:$0xf]
    %v163 = vld [vmem:[#allocation5 + $0x3c] sm:$0xf]
    %v172 = vunpack.c.l.b16 %v140
    %v173 = vunpack.c.l.b16 %v141
    %v174 = vunpack.c.l.b16 %v142
    %v175 = vunpack.c.l.b16 %v143
    %v176 = vunpack.c.l.b16 %v144
    %v177 = vunpack.c.l.b16 %v145
    %v178 = vunpack.c.l.b16 %v146
    %v179 = vunpack.c.l.b16 %v147
    %vm180 = vcmask 1041409
    %v181 = vsel %vm180, %v173, %v172
    %vm182 = vcmask 1042434
    %v183 = vsel %vm182, %v174, %v181
    %vm184 = vcmask 1043459
    %v185 = vsel %vm184, %v175, %v183
    %vm186 = vcmask 1044484
    %v187 = vsel %vm186, %v176, %v185
    %vm188 = vcmask 1045509
    %v189 = vsel %vm188, %v177, %v187
    %vm190 = vcmask 1046534
    %v191 = vsel %vm190, %v178, %v189
    %vm192 = vcmask 1047559
    %v193 = vsel %vm192, %v179, %v191
    %v194 = vpack.c.b16 %v193, %v193
    %v212 = vunpack.c.l.b16 %v148
    %v213 = vunpack.c.l.b16 %v149
    %v214 = vunpack.c.l.b16 %v150
    %v215 = vunpack.c.l.b16 %v151
    %v216 = vunpack.c.l.b16 %v152
    %v217 = vunpack.c.l.b16 %v153
    %v218 = vunpack.c.l.b16 %v154
    %v219 = vunpack.c.l.b16 %v155
    %v220 = vunpack.c.l.b16 %v156
    %v221 = vunpack.c.l.b16 %v157
    %v222 = vunpack.c.l.b16 %v158
    %v223 = vunpack.c.l.b16 %v159
    %v224 = vunpack.c.l.b16 %v160
    %v225 = vunpack.c.l.b16 %v161
    %v226 = vunpack.c.l.b16 %v162
    %v227 = vunpack.c.l.b16 %v163
    %v228 = vpack.c.b16 %v213, %v212
    %v229 = vpack.c.b16 %v215, %v214
    %v230 = vpack.c.b16 %v217, %v216
    %v231 = vpack.c.b16 %v219, %v218
    %v232 = vpack.c.b16 %v221, %v220
    %v233 = vpack.c.b16 %v223, %v222
    %v234 = vpack.c.b16 %v225, %v224
    %v235 = vpack.c.b16 %v227, %v226
    %244 = vmatprep.subr.bf16.mxu0 0
    %245 = vmatpush1.bf16.msra.mxu0 %v235
    %246 = vmatprep.subr.bf16.mxu0 0
    %247 = vmatpush1.bf16.msra.mxu0 %v234
    %248 = vmatprep.subr.bf16.mxu0 0
    %249 = vmatpush1.bf16.msra.mxu0 %v233
    %250 = vmatprep.subr.bf16.mxu0 0
    %251 = vmatpush1.bf16.msra.mxu0 %v232
    %252 = vmatprep.subr.bf16.mxu0 0
    %253 = vmatpush1.bf16.msra.mxu0 %v231
    %254 = vmatprep.subr.bf16.mxu0 0
    %255 = vmatpush1.bf16.msra.mxu0 %v230
    %256 = vmatprep.subr.bf16.mxu0 0
    %257 = vmatpush1.bf16.msra.mxu0 %v229
    %258 = vmatprep.subr.bf16.mxu0 0
    %259 = vmatpush1.bf16.msra.mxu0 %v228
    %260 = vmatprep.subr.bf16.mxu0 0
    %261 = vmatpush2.bf16.msra.mxu0 0
    %262 = vmatprep.subr.bf16.mxu0 0
    %263 = vmatpush2.bf16.msra.mxu0 0
    %264 = vmatprep.subr.bf16.mxu0 0
    %265 = vmatpush2.bf16.msra.mxu0 0
    %266 = vmatprep.subr.bf16.mxu0 0
    %267 = vmatpush2.bf16.msra.mxu0 0
    %268 = vmatprep.subr.bf16.mxu0 0
    %269 = vmatpush2.bf16.msra.mxu0 0
    %270 = vmatprep.subr.bf16.mxu0 0
    %271 = vmatpush2.bf16.msra.mxu0 0
    %272 = vmatprep.subr.bf16.mxu0 0
    %273 = vmatpush2.bf16.msra.mxu0 0
    %274 = vmatprep.subr.bf16.mxu0 0
    %275 = vmatpush2.bf16.msra.mxu0 0
    %276 = vmatprep.mubr.bf16.mxu0 0
    %277 = vmatmul.mubr.bf16.gmra.mxu0 %v194
    %v278 = vpop.f32.mrf.mxu0
    %v279 = vadd.f32 0.0, %v278
    %v280 = vpop.f32.mrf.mxu0
    %v281 = vpop.f32.mrf.mxu0
    %v282 = vpop.f32.mrf.mxu0
    %283 = vdwg.mxu0
    %v284 = vmul.f32 %v279, %v279
    %285 = vadd.xlane.f32.xlu0 %v284
    %v286 = vpop.xlane.xlu0 %285
    %v287 = vmax.f32 %v286, 1e-12
    %v288 = vrsqrt.pop %v287
    %v289 = vmul.f32 %v279, %v288
    %v290 = vpack.c.bf16 %v289, %v289
    %v291 = vld [vmem:[#allocation7] sm:$0xf]
    %v292 = vld [vmem:[#allocation7 + $0x4] sm:$0xf]
    %v293 = vld [vmem:[#allocation7 + $0x8] sm:$0xf]
    %v294 = vld [vmem:[#allocation7 + $0xc] sm:$0xf]
    %v295 = vld [vmem:[#allocation7 + $0x10] sm:$0xf]
    %v296 = vld [vmem:[#allocation7 + $0x14] sm:$0xf]
    %v297 = vld [vmem:[#allocation7 + $0x18] sm:$0xf]
    %v298 = vld [vmem:[#allocation7 + $0x1c] sm:$0xf]
    %v299 = vld [vmem:[#allocation7 + $0x20] sm:$0xf]
    %v300 = vld [vmem:[#allocation7 + $0x24] sm:$0xf]
    %v301 = vld [vmem:[#allocation7 + $0x28] sm:$0xf]
    %v302 = vld [vmem:[#allocation7 + $0x2c] sm:$0xf]
    %v303 = vld [vmem:[#allocation7 + $0x30] sm:$0xf]
    %v304 = vld [vmem:[#allocation7 + $0x34] sm:$0xf]
    %v305 = vld [vmem:[#allocation7 + $0x38] sm:$0xf]
    %v306 = vld [vmem:[#allocation7 + $0x3c] sm:$0xf]
    %v323 = vunpack.c.l.b16 %v291
    %v324 = vunpack.c.l.b16 %v292
    %v325 = vunpack.c.l.b16 %v293
    %v326 = vunpack.c.l.b16 %v294
    %v327 = vunpack.c.l.b16 %v295
    %v328 = vunpack.c.l.b16 %v296
    %v329 = vunpack.c.l.b16 %v297
    %v330 = vunpack.c.l.b16 %v298
    %v331 = vunpack.c.l.b16 %v299
    %v332 = vunpack.c.l.b16 %v300
    %v333 = vunpack.c.l.b16 %v301
    %v334 = vunpack.c.l.b16 %v302
    %v335 = vunpack.c.l.b16 %v303
    %v336 = vunpack.c.l.b16 %v304
    %v337 = vunpack.c.l.b16 %v305
    %v338 = vunpack.c.l.b16 %v306
    %v339 = vpack.c.b16 %v324, %v323
    %v340 = vpack.c.b16 %v326, %v325
    %v341 = vpack.c.b16 %v328, %v327
    %v342 = vpack.c.b16 %v330, %v329
    %v343 = vpack.c.b16 %v332, %v331
    %v344 = vpack.c.b16 %v334, %v333
    %v345 = vpack.c.b16 %v336, %v335
    %v346 = vpack.c.b16 %v338, %v337
    %355 = vmatprep.subr.bf16.mxu0 0
    %356 = vmatpush1.bf16.msra.mxu0 %v346
    %357 = vmatprep.subr.bf16.mxu0 0
    %358 = vmatpush1.bf16.msra.mxu0 %v345
    %359 = vmatprep.subr.bf16.mxu0 0
    %360 = vmatpush1.bf16.msra.mxu0 %v344
    %361 = vmatprep.subr.bf16.mxu0 0
    %362 = vmatpush1.bf16.msra.mxu0 %v343
    %363 = vmatprep.subr.bf16.mxu0 0
    %364 = vmatpush1.bf16.msra.mxu0 %v342
    %365 = vmatprep.subr.bf16.mxu0 0
    %366 = vmatpush1.bf16.msra.mxu0 %v341
    %367 = vmatprep.subr.bf16.mxu0 0
    %368 = vmatpush1.bf16.msra.mxu0 %v340
    %369 = vmatprep.subr.bf16.mxu0 0
    %370 = vmatpush1.bf16.msra.mxu0 %v339
    %371 = vmatprep.subr.bf16.mxu0 0
    %372 = vmatpush2.bf16.msra.mxu0 0
    %373 = vmatprep.subr.bf16.mxu0 0
    %374 = vmatpush2.bf16.msra.mxu0 0
    %375 = vmatprep.subr.bf16.mxu0 0
    %376 = vmatpush2.bf16.msra.mxu0 0
    %377 = vmatprep.subr.bf16.mxu0 0
    %378 = vmatpush2.bf16.msra.mxu0 0
    %379 = vmatprep.subr.bf16.mxu0 0
    %380 = vmatpush2.bf16.msra.mxu0 0
    %381 = vmatprep.subr.bf16.mxu0 0
    %382 = vmatpush2.bf16.msra.mxu0 0
    %383 = vmatprep.subr.bf16.mxu0 0
    %384 = vmatpush2.bf16.msra.mxu0 0
    %385 = vmatprep.subr.bf16.mxu0 0
    %386 = vmatpush2.bf16.msra.mxu0 0
    %387 = vmatprep.mubr.bf16.mxu0 0
    %388 = vmatmul.mubr.bf16.gmra.mxu0 %v290
    %v389 = vpop.f32.mrf.mxu0
    %v390 = vadd.f32 0.0, %v389
    %v391 = vpop.f32.mrf.mxu0
    %v392 = vpop.f32.mrf.mxu0
    %v393 = vpop.f32.mrf.mxu0
    %394 = vdwg.mxu0
    %v395 = vlaneseq
    %v396 = vand.u32 %v395, 127
    %v397 = vld [vmem:[%s3] sm:$0xff]
    %398 = vset.pattern.permute.xlu0 0
    %399 = vperm.xlu0 %398, %v397
    %v400 = vpop.permute.xlu0 %399
    %vm401 = vcmp.eq.s32.totalorder %v396, %v400
    %v402 = vsel %vm401, %v390, 0.0
    %403 = vadd.xlane.f32.xlu0 %v402
    %v404 = vpop.xlane.xlu0 %403
    %vm405 = vcmp.lt.s32.totalorder %v396, 10
    %vm406 = vmxor %vm401, 1
    %vm407 = vmand %vm405, %vm406
    %v408 = vadd.f32 %v390, 0.2
    %v409 = vsub.f32 %v408, %v404
    %v410 = vsel %vm407, %v409, -1e+30
    %411 = vmax.xlane.f32.xlu0 %v410
    %v412 = vpop.xlane.xlu0 %411
    %v413 = vmax.f32 %v412, 0.0
    %414 = vst [vmem:[#allocation8] sm:$0xff] %v413
    // Predicated region
    $region30: #{tpu_custom_call.1} parent=1 // pred_check
      _
    $region31: #{tpu_custom_call.1} parent=1 // pred_check_branch
      %416 = sbr.rel (0) target = $region33
    $region32: #{tpu_custom_call.1} parent=1 // pred_region
      %s418 = ssub.s32 128, 128
      %419 = vsyncadd [#allocation4], %s418
      %s421 = sshll.u32 [#allocation8], 4
      %s422 = int_to_ptr.vmem [resolvable:$true] %s421
      %424 = dma.vmem_to_hbm [thread:$0]  %s422, 128, %s4, [#allocation4]
    $region33: #{tpu_custom_call.1} parent=1 // pred_fallthru
      _
    // Predicated region
    $region34: #{tpu_custom_call.1} parent=1 // pred_check
      _
    $region35: #{tpu_custom_call.1} parent=1 // pred_check_branch
      %426 = sbr.rel (0) target = $region37
    $region36: #{tpu_custom_call.1} parent=1 // pred_region
      %427 = dma.done [#allocation4], 128
    $region37: #{tpu_custom_call.1} parent=1 // pred_fallthru
      _
    %428 = vsyncpa [#allocation3], 1
    %429 = vsyncpa [#allocation6], 1
    %430 = vsyncpa [#allocation4], 1

// kernel: tpu_custom_call.1
$region0: #{tpu_custom_call.1}
  #allocation0 [shape = 'u32[]', space=smem, size = 0x4, offset = 0x4, fixed_abs, tag = 'smem constant byte address 0x4 - core index']
  #allocation1 [shape = 'u32[144,128]{1,0:T(1,128)}', space=vmem, size = 0x12000, scoped, tag = 'internal scratch']
  %s0 = inlined_call_operand.hbm [shape: f32[8,16,128], index: 0, kind: input, shape index: {}]
  %s1 = inlined_call_operand.hbm [shape: bf16[128,128], index: 1, kind: input, shape index: {}]
  %s2 = inlined_call_operand.hbm [shape: bf16[128,128], index: 2, kind: input, shape index: {}]
  %s3 = inlined_call_operand.vmem [shape: s32[8,1], index: 3, kind: input, shape index: {}]
  %s4 = inlined_call_operand.hbm [shape: f32[8,128], index: 4, kind: output, shape index: {}]
  %s5 = sld [smem:[#allocation0]]
  $region38: #{tpu_custom_call.1} parent=0
    _
  %s7 = ssub.s32 1, %s5
  %s8 = scalar_select 0, %s7, %s5
  $region1: #{tpu_custom_call.1} parent=0
    #allocation2 [shape = 'u8[65536]{0}', space=vmem, size = 0x10000, scoped, tag = 'input window, operand 0, single buffered']
    #allocation3 [shape = 's32[1]{0}', space=sflag, size = 0x4, scoped, tag = 'scoped memory for tpu_custom_call.1']
    #allocation4 [shape = 's32[1]{0}', space=sflag, size = 0x4, scoped, tag = 'scoped memory for tpu_custom_call.1']
    #allocation5 [shape = 'u8[32768]{0}', space=vmem, size = 0x8000, scoped, tag = 'input window, operand 1, single buffered']
    #allocation6 [shape = 's32[1]{0}', space=sflag, size = 0x4, scoped, tag = 'scoped memory for tpu_custom_call.1']
    #allocation7 [shape = 'u8[32768]{0}', space=vmem, size = 0x8000, scoped, tag = 'input window, operand 2, single buffered']
    #allocation8 [shape = 'u8[4096]{0}', space=vmem, size = 0x1000, scoped, tag = 'output window, operand 0, single buffered']
    %9 = vsyncpa [#allocation3], 0
    %10 = vsyncpa [#allocation6], 0
    %11 = vsyncpa [#allocation4], 0
    // Predicated region
    $region2: #{tpu_custom_call.1} parent=1 // pred_check
      _
    $region3: #{tpu_custom_call.1} parent=1 // pred_check_branch
      %13 = sbr.rel (0) target = $region5
    $region4: #{tpu_custom_call.1} parent=1 // pred_region
      %s15 = ssub.s32 2048, 2048
      %16 = vsyncadd [#allocation3], %s15
      %s17 = sshll.u32 [#allocation2], 4
      %s18 = int_to_ptr.vmem [resolvable:$true] %s17
      %23 = dma.hbm_to_vmem [thread:$0]  %s0, 2048, %s18, [#allocation3], 128, 128, 8
    $region5: #{tpu_custom_call.1} parent=1 // pred_fallthru
      _
    // Predicated region
    $region6: #{tpu_custom_call.1} parent=1 // pred_check
      _
    $region7: #{tpu_custom_call.1} parent=1 // pred_check_branch
      %25 = sbr.rel (0) target = $region9
    $region8: #{tpu_custom_call.1} parent=1 // pred_region
      %s27 = ssub.s32 1024, 1024
      %28 = vsyncadd [#allocation6], %s27
      %s29 = sshll.u32 [#allocation5], 4
      %s30 = int_to_ptr.vmem [resolvable:$true] %s29
      %35 = dma.hbm_to_vmem [thread:$0]  %s1, 1024, %s30, [#allocation6], 64, 64, 4
    $region9: #{tpu_custom_call.1} parent=1 // pred_fallthru
      _
    // Predicated region
    $region10: #{tpu_custom_call.1} parent=1 // pred_check
      _
    $region11: #{tpu_custom_call.1} parent=1 // pred_check_branch
      %37 = sbr.rel (0) target = $region13
    $region12: #{tpu_custom_call.1} parent=1 // pred_region
      %s39 = ssub.s32 1024, 1024
      %40 = vsyncadd [#allocation6], %s39
      %s41 = sshll.u32 [#allocation7], 4
      %s42 = int_to_ptr.vmem [resolvable:$true] %s41
      %47 = dma.hbm_to_vmem [thread:$0]  %s2, 1024, %s42, [#allocation6], 64, 64, 4
    $region13: #{tpu_custom_call.1} parent=1 // pred_fallthru
      _
    // Predicated region
    $region14: #{tpu_custom_call.1} parent=1 // pred_check
      _
    $region15: #{tpu_custom_call.1} parent=1 // pred_check_branch
      %49 = sbr.rel (0) target = $region17
    $region16: #{tpu_custom_call.1} parent=1 // pred_region
      _
    $region17: #{tpu_custom_call.1} parent=1 // pred_fallthru
      _
    // Predicated region
    $region18: #{tpu_custom_call.1} parent=1 // pred_check
      _
    $region19: #{tpu_custom_call.1} parent=1 // pred_check_branch
      %51 = sbr.rel (0) target = $region21
    $region20: #{tpu_custom_call.1} parent=1 // pred_region
      %52 = dma.done [#allocation3], 2048
    $region21: #{tpu_custom_call.1} parent=1 // pred_fallthru
      _
    // Predicated region
    $region22: #{tpu_custom_call.1} parent=1 // pred_check
      _
    $region23: #{tpu_custom_call.1} parent=1 // pred_check_branch
      %54 = sbr.rel (0) target = $region25
    $region24: #{tpu_custom_call.1} parent=1 // pred_region
      %55 = dma.done [#allocation6], 1024
    $region25: #{tpu_custom_call.1} parent=1 // pred_fallthru
      _
    // Predicated region
    $region26: #{tpu_custom_call.1} parent=1 // pred_check
      _
    $region27: #{tpu_custom_call.1} parent=1 // pred_check_branch
      %57 = sbr.rel (0) target = $region29
    $region28: #{tpu_custom_call.1} parent=1 // pred_region
      %58 = dma.done [#allocation6], 1024
    $region29: #{tpu_custom_call.1} parent=1 // pred_fallthru
      _
    %v60 = vld [vmem:[#allocation2] sm:$0xff]
    %v61 = vld [vmem:[#allocation2 + $0x8] sm:$0xff]
    %v62 = vld [vmem:[#allocation2 + $0x10] sm:$0xff]
    %v63 = vld [vmem:[#allocation2 + $0x18] sm:$0xff]
    %v64 = vld [vmem:[#allocation2 + $0x20] sm:$0xff]
    %v65 = vld [vmem:[#allocation2 + $0x28] sm:$0xff]
    %v66 = vld [vmem:[#allocation2 + $0x30] sm:$0xff]
    %v67 = vld [vmem:[#allocation2 + $0x38] sm:$0xff]
    %v68 = vld [vmem:[#allocation2 + $0x40] sm:$0xff]
    %v69 = vld [vmem:[#allocation2 + $0x48] sm:$0xff]
    %v70 = vld [vmem:[#allocation2 + $0x50] sm:$0xff]
    %v71 = vld [vmem:[#allocation2 + $0x58] sm:$0xff]
    %v72 = vld [vmem:[#allocation2 + $0x60] sm:$0xff]
    %v73 = vld [vmem:[#allocation2 + $0x68] sm:$0xff]
    %v74 = vld [vmem:[#allocation2 + $0x70] sm:$0xff]
    %v75 = vld [vmem:[#allocation2 + $0x78] sm:$0xff]
    %v76 = vadd.f32 %v60, %v61
    %v77 = vrot.slane %v76, 4
    %v78 = vadd.f32 %v76, %v77
    %v79 = vrot.slane %v78, 2
    %v80 = vadd.f32 %v78, %v79
    %v81 = vrot.slane %v80, 1
    %v82 = vadd.f32 %v80, %v81
    %v83 = vadd.f32 %v62, %v63
    %v84 = vrot.slane %v83, 4
    %v85 = vadd.f32 %v83, %v84
    %v86 = vrot.slane %v85, 2
    %v87 = vadd.f32 %v85, %v86
    %v88 = vrot.slane %v87, 1
    %v89 = vadd.f32 %v87, %v88
    %v90 = vadd.f32 %v64, %v65
    %v91 = vrot.slane %v90, 4
    %v92 = vadd.f32 %v90, %v91
    %v93 = vrot.slane %v92, 2
    %v94 = vadd.f32 %v92, %v93
    %v95 = vrot.slane %v94, 1
    %v96 = vadd.f32 %v94, %v95
    %v97 = vadd.f32 %v66, %v67
    %v98 = vrot.slane %v97, 4
    %v99 = vadd.f32 %v97, %v98
    %v100 = vrot.slane %v99, 2
    %v101 = vadd.f32 %v99, %v100
    %v102 = vrot.slane %v101, 1
    %v103 = vadd.f32 %v101, %v102
    %v104 = vadd.f32 %v68, %v69
    %v105 = vrot.slane %v104, 4
    %v106 = vadd.f32 %v104, %v105
    %v107 = vrot.slane %v106, 2
    %v108 = vadd.f32 %v106, %v107
    %v109 = vrot.slane %v108, 1
    %v110 = vadd.f32 %v108, %v109
    %v111 = vadd.f32 %v70, %v71
    %v112 = vrot.slane %v111, 4
    %v113 = vadd.f32 %v111, %v112
    %v114 = vrot.slane %v113, 2
    %v115 = vadd.f32 %v113, %v114
    %v116 = vrot.slane %v115, 1
    %v117 = vadd.f32 %v115, %v116
    %v118 = vadd.f32 %v72, %v73
    %v119 = vrot.slane %v118, 4
    %v120 = vadd.f32 %v118, %v119
    %v121 = vrot.slane %v120, 2
    %v122 = vadd.f32 %v120, %v121
    %v123 = vrot.slane %v122, 1
    %v124 = vadd.f32 %v122, %v123
    %v125 = vadd.f32 %v74, %v75
    %v126 = vrot.slane %v125, 4
    %v127 = vadd.f32 %v125, %v126
    %v128 = vrot.slane %v127, 2
    %v129 = vadd.f32 %v127, %v128
    %v130 = vrot.slane %v129, 1
    %v131 = vadd.f32 %v129, %v130
    %v132 = vmul.f32 %v82, 0.015625
    %v133 = vmul.f32 %v89, 0.015625
    %v134 = vmul.f32 %v96, 0.015625
    %v135 = vmul.f32 %v103, 0.015625
    %v136 = vmul.f32 %v110, 0.015625
    %v137 = vmul.f32 %v117, 0.015625
    %v138 = vmul.f32 %v124, 0.015625
    %v139 = vmul.f32 %v131, 0.015625
    %v140 = vpack.c.bf16 %v132, %v132
    %v141 = vpack.c.bf16 %v133, %v133
    %v142 = vpack.c.bf16 %v134, %v134
    %v143 = vpack.c.bf16 %v135, %v135
    %v144 = vpack.c.bf16 %v136, %v136
    %v145 = vpack.c.bf16 %v137, %v137
    %v146 = vpack.c.bf16 %v138, %v138
    %v147 = vpack.c.bf16 %v139, %v139
    %v148 = vld [vmem:[#allocation5] sm:$0xf]
    %v149 = vld [vmem:[#allocation5 + $0x4] sm:$0xf]
    %v150 = vld [vmem:[#allocation5 + $0x8] sm:$0xf]
    %v151 = vld [vmem:[#allocation5 + $0xc] sm:$0xf]
    %v152 = vld [vmem:[#allocation5 + $0x10] sm:$0xf]
    %v153 = vld [vmem:[#allocation5 + $0x14] sm:$0xf]
    %v154 = vld [vmem:[#allocation5 + $0x18] sm:$0xf]
    %v155 = vld [vmem:[#allocation5 + $0x1c] sm:$0xf]
    %v156 = vld [vmem:[#allocation5 + $0x20] sm:$0xf]
    %v157 = vld [vmem:[#allocation5 + $0x24] sm:$0xf]
    %v158 = vld [vmem:[#allocation5 + $0x28] sm:$0xf]
    %v159 = vld [vmem:[#allocation5 + $0x2c] sm:$0xf]
    %v160 = vld [vmem:[#allocation5 + $0x30] sm:$0xf]
    %v161 = vld [vmem:[#allocation5 + $0x34] sm:$0xf]
    %v162 = vld [vmem:[#allocation5 + $0x38] sm:$0xf]
    %v163 = vld [vmem:[#allocation5 + $0x3c] sm:$0xf]
    %v172 = vunpack.c.l.b16 %v140
    %v173 = vunpack.c.l.b16 %v141
    %v174 = vunpack.c.l.b16 %v142
    %v175 = vunpack.c.l.b16 %v143
    %v176 = vunpack.c.l.b16 %v144
    %v177 = vunpack.c.l.b16 %v145
    %v178 = vunpack.c.l.b16 %v146
    %v179 = vunpack.c.l.b16 %v147
    %vm180 = vcmask 1041409
    %v181 = vsel %vm180, %v173, %v172
    %vm182 = vcmask 1042434
    %v183 = vsel %vm182, %v174, %v181
    %vm184 = vcmask 1043459
    %v185 = vsel %vm184, %v175, %v183
    %vm186 = vcmask 1044484
    %v187 = vsel %vm186, %v176, %v185
    %vm188 = vcmask 1045509
    %v189 = vsel %vm188, %v177, %v187
    %vm190 = vcmask 1046534
    %v191 = vsel %vm190, %v178, %v189
    %vm192 = vcmask 1047559
    %v193 = vsel %vm192, %v179, %v191
    %v194 = vpack.c.b16 %v193, %v193
    %v212 = vunpack.c.l.b16 %v148
    %v213 = vunpack.c.l.b16 %v149
    %v214 = vunpack.c.l.b16 %v150
    %v215 = vunpack.c.l.b16 %v151
    %v216 = vunpack.c.l.b16 %v152
    %v217 = vunpack.c.l.b16 %v153
    %v218 = vunpack.c.l.b16 %v154
    %v219 = vunpack.c.l.b16 %v155
    %v220 = vunpack.c.l.b16 %v156
    %v221 = vunpack.c.l.b16 %v157
    %v222 = vunpack.c.l.b16 %v158
    %v223 = vunpack.c.l.b16 %v159
    %v224 = vunpack.c.l.b16 %v160
    %v225 = vunpack.c.l.b16 %v161
    %v226 = vunpack.c.l.b16 %v162
    %v227 = vunpack.c.l.b16 %v163
    %v228 = vpack.c.b16 %v213, %v212
    %v229 = vpack.c.b16 %v215, %v214
    %v230 = vpack.c.b16 %v217, %v216
    %v231 = vpack.c.b16 %v219, %v218
    %v232 = vpack.c.b16 %v221, %v220
    %v233 = vpack.c.b16 %v223, %v222
    %v234 = vpack.c.b16 %v225, %v224
    %v235 = vpack.c.b16 %v227, %v226
    %244 = vmatprep.subr.bf16.mxu0 0
    %245 = vmatpush1.bf16.msra.mxu0 %v235
    %246 = vmatprep.subr.bf16.mxu0 0
    %247 = vmatpush1.bf16.msra.mxu0 %v234
    %248 = vmatprep.subr.bf16.mxu0 0
    %249 = vmatpush1.bf16.msra.mxu0 %v233
    %250 = vmatprep.subr.bf16.mxu0 0
    %251 = vmatpush1.bf16.msra.mxu0 %v232
    %252 = vmatprep.subr.bf16.mxu0 0
    %253 = vmatpush1.bf16.msra.mxu0 %v231
    %254 = vmatprep.subr.bf16.mxu0 0
    %255 = vmatpush1.bf16.msra.mxu0 %v230
    %256 = vmatprep.subr.bf16.mxu0 0
    %257 = vmatpush1.bf16.msra.mxu0 %v229
    %258 = vmatprep.subr.bf16.mxu0 0
    %259 = vmatpush1.bf16.msra.mxu0 %v228
    %260 = vmatprep.subr.bf16.mxu0 0
    %261 = vmatpush2.bf16.msra.mxu0 0
    %262 = vmatprep.subr.bf16.mxu0 0
    %263 = vmatpush2.bf16.msra.mxu0 0
    %264 = vmatprep.subr.bf16.mxu0 0
    %265 = vmatpush2.bf16.msra.mxu0 0
    %266 = vmatprep.subr.bf16.mxu0 0
    %267 = vmatpush2.bf16.msra.mxu0 0
    %268 = vmatprep.subr.bf16.mxu0 0
    %269 = vmatpush2.bf16.msra.mxu0 0
    %270 = vmatprep.subr.bf16.mxu0 0
    %271 = vmatpush2.bf16.msra.mxu0 0
    %272 = vmatprep.subr.bf16.mxu0 0
    %273 = vmatpush2.bf16.msra.mxu0 0
    %274 = vmatprep.subr.bf16.mxu0 0
    %275 = vmatpush2.bf16.msra.mxu0 0
    %276 = vmatprep.mubr.bf16.mxu0 0
    %277 = vmatmul.mubr.bf16.gmra.mxu0 %v194
    %v278 = vpop.f32.mrf.mxu0
    %v279 = vadd.f32 0.0, %v278
    %v280 = vpop.f32.mrf.mxu0
    %v281 = vpop.f32.mrf.mxu0
    %v282 = vpop.f32.mrf.mxu0
    %283 = vdwg.mxu0
    %v284 = vmul.f32 %v279, %v279
    %285 = vadd.xlane.f32.xlu0 %v284
    %v286 = vpop.xlane.xlu0 %285
    %v287 = vmax.f32 %v286, 1e-12
    %v288 = vrsqrt.pop %v287
    %v289 = vmul.f32 %v279, %v288
    %v290 = vpack.c.bf16 %v289, %v289
    %v291 = vld [vmem:[#allocation7] sm:$0xf]
    %v292 = vld [vmem:[#allocation7 + $0x4] sm:$0xf]
    %v293 = vld [vmem:[#allocation7 + $0x8] sm:$0xf]
    %v294 = vld [vmem:[#allocation7 + $0xc] sm:$0xf]
    %v295 = vld [vmem:[#allocation7 + $0x10] sm:$0xf]
    %v296 = vld [vmem:[#allocation7 + $0x14] sm:$0xf]
    %v297 = vld [vmem:[#allocation7 + $0x18] sm:$0xf]
    %v298 = vld [vmem:[#allocation7 + $0x1c] sm:$0xf]
    %v299 = vld [vmem:[#allocation7 + $0x20] sm:$0xf]
    %v300 = vld [vmem:[#allocation7 + $0x24] sm:$0xf]
    %v301 = vld [vmem:[#allocation7 + $0x28] sm:$0xf]
    %v302 = vld [vmem:[#allocation7 + $0x2c] sm:$0xf]
    %v303 = vld [vmem:[#allocation7 + $0x30] sm:$0xf]
    %v304 = vld [vmem:[#allocation7 + $0x34] sm:$0xf]
    %v305 = vld [vmem:[#allocation7 + $0x38] sm:$0xf]
    %v306 = vld [vmem:[#allocation7 + $0x3c] sm:$0xf]
    %v323 = vunpack.c.l.b16 %v291
    %v324 = vunpack.c.l.b16 %v292
    %v325 = vunpack.c.l.b16 %v293
    %v326 = vunpack.c.l.b16 %v294
    %v327 = vunpack.c.l.b16 %v295
    %v328 = vunpack.c.l.b16 %v296
    %v329 = vunpack.c.l.b16 %v297
    %v330 = vunpack.c.l.b16 %v298
    %v331 = vunpack.c.l.b16 %v299
    %v332 = vunpack.c.l.b16 %v300
    %v333 = vunpack.c.l.b16 %v301
    %v334 = vunpack.c.l.b16 %v302
    %v335 = vunpack.c.l.b16 %v303
    %v336 = vunpack.c.l.b16 %v304
    %v337 = vunpack.c.l.b16 %v305
    %v338 = vunpack.c.l.b16 %v306
    %v339 = vpack.c.b16 %v324, %v323
    %v340 = vpack.c.b16 %v326, %v325
    %v341 = vpack.c.b16 %v328, %v327
    %v342 = vpack.c.b16 %v330, %v329
    %v343 = vpack.c.b16 %v332, %v331
    %v344 = vpack.c.b16 %v334, %v333
    %v345 = vpack.c.b16 %v336, %v335
    %v346 = vpack.c.b16 %v338, %v337
    %355 = vmatprep.subr.bf16.mxu0 0
    %356 = vmatpush1.bf16.msra.mxu0 %v346
    %357 = vmatprep.subr.bf16.mxu0 0
    %358 = vmatpush1.bf16.msra.mxu0 %v345
    %359 = vmatprep.subr.bf16.mxu0 0
    %360 = vmatpush1.bf16.msra.mxu0 %v344
    %361 = vmatprep.subr.bf16.mxu0 0
    %362 = vmatpush1.bf16.msra.mxu0 %v343
    %363 = vmatprep.subr.bf16.mxu0 0
    %364 = vmatpush1.bf16.msra.mxu0 %v342
    %365 = vmatprep.subr.bf16.mxu0 0
    %366 = vmatpush1.bf16.msra.mxu0 %v341
    %367 = vmatprep.subr.bf16.mxu0 0
    %368 = vmatpush1.bf16.msra.mxu0 %v340
    %369 = vmatprep.subr.bf16.mxu0 0
    %370 = vmatpush1.bf16.msra.mxu0 %v339
    %371 = vmatprep.subr.bf16.mxu0 0
    %372 = vmatpush2.bf16.msra.mxu0 0
    %373 = vmatprep.subr.bf16.mxu0 0
    %374 = vmatpush2.bf16.msra.mxu0 0
    %375 = vmatprep.subr.bf16.mxu0 0
    %376 = vmatpush2.bf16.msra.mxu0 0
    %377 = vmatprep.subr.bf16.mxu0 0
    %378 = vmatpush2.bf16.msra.mxu0 0
    %379 = vmatprep.subr.bf16.mxu0 0
    %380 = vmatpush2.bf16.msra.mxu0 0
    %381 = vmatprep.subr.bf16.mxu0 0
    %382 = vmatpush2.bf16.msra.mxu0 0
    %383 = vmatprep.subr.bf16.mxu0 0
    %384 = vmatpush2.bf16.msra.mxu0 0
    %385 = vmatprep.subr.bf16.mxu0 0
    %386 = vmatpush2.bf16.msra.mxu0 0
    %387 = vmatprep.mubr.bf16.mxu0 0
    %388 = vmatmul.mubr.bf16.gmra.mxu0 %v290
    %v389 = vpop.f32.mrf.mxu0
    %v390 = vadd.f32 0.0, %v389
    %v391 = vpop.f32.mrf.mxu0
    %v392 = vpop.f32.mrf.mxu0
    %v393 = vpop.f32.mrf.mxu0
    %394 = vdwg.mxu0
    %v395 = vlaneseq
    %v396 = vand.u32 %v395, 127
    %v397 = vld [vmem:[%s3] sm:$0xff]
    %398 = vset.pattern.permute.xlu0 0
    %399 = vperm.xlu0 %398, %v397
    %v400 = vpop.permute.xlu0 %399
    %vm401 = vcmp.eq.s32.totalorder %v396, %v400
    %v402 = vsel %vm401, %v390, 0.0
    %403 = vadd.xlane.f32.xlu0 %v402
    %v404 = vpop.xlane.xlu0 %403
    %vm405 = vcmp.lt.s32.totalorder %v396, 10
    %vm406 = vmxor %vm401, 1
    %vm407 = vmand %vm405, %vm406
    %v408 = vadd.f32 %v390, 0.2
    %v409 = vsub.f32 %v408, %v404
    %v410 = vsel %vm407, %v409, -1e+30
    %411 = vmax.xlane.f32.xlu0 %v410
    %v412 = vpop.xlane.xlu0 %411
    %v413 = vmax.f32 %v412, 0.0
    %414 = vst [vmem:[#allocation8] sm:$0xff] %v413
    // Predicated region
    $region30: #{tpu_custom_call.1} parent=1 // pred_check
      _
    $region31: #{tpu_custom_call.1} parent=1 // pred_check_branch
      %416 = sbr.rel (0) target = $region33
    $region32: #{tpu_custom_call.1} parent=1 // pred_region
      %s418 = ssub.s32 128, 128
      %419 = vsyncadd [#allocation4], %s418
      %s421 = sshll.u32 [#allocation8], 4
      %s422 = int_to_ptr.vmem [resolvable:$true] %s421
      %424 = dma.vmem_to_hbm [thread:$0]  %s422, 128, %s4, [#allocation4]
    $region33: #{tpu_custom_call.1} parent=1 // pred_fallthru
      _
    // Predicated region
    $region34: #{tpu_custom_call.1} parent=1 // pred_check
      _
    $region35: #{tpu_custom_call.1} parent=1 // pred_check_branch
      %426 = sbr.rel (0) target = $region37
    $region36: #{tpu_custom_call.1} parent=1 // pred_region
      %427 = dma.done [#allocation4], 128
    $region37: #{tpu_custom_call.1} parent=1 // pred_fallthru
      _
    %428 = vsyncpa [#allocation3], 1
    %429 = vsyncpa [#allocation6], 1
    %430 = vsyncpa [#allocation4], 1

</llo_original>
